<compile_context>
chip_gen: v7x
topology: tpu7x:2x2x1
jax: 0.10.0
libtpu: 0.0.40
codegen_flags: <defaults>
</compile_context>

<pallas_src>
import functools

import jax
import jax.numpy as jnp
from jax.experimental import pallas as pl
from jax.experimental.pallas import tpu as pltpu

_LANES = 128  # vreg lane width


def _cdiv(a, b):
    return -(-a // b)


def _global_maxpool_kernel(x_ref, o_ref, acc_ref, *, hw_total, hw_tile, cw, min_val):
    # x_ref: (1, Ct, HWt) input block     o_ref: (1, 1, Ct) lane-dense output block
    # acc_ref: (Ct, cw) small VMEM scratch (running max across the K grid axis)
    k = pl.program_id(2)
    num_k = _cdiv(hw_total, hw_tile)                    # static
    tail_valid = hw_total - (num_k - 1) * hw_tile       # static valid lanes of last K block

    @pl.when(k == 0)
    def _init():
        acc_ref[...] = jnp.full(acc_ref.shape, min_val, acc_ref.dtype)

    def fold(valid):
        # Reduce the leading `valid` (static) lanes of this block into acc.
        # Chain of jnp.maximum over static cw-lane chunks: 1 vld + 1 vmax per
        # data vreg; the tiny acc read/write is amortized over the whole block.
        part = acc_ref[...]
        n_full = valid // cw
        rem = valid - n_full * cw
        for i in range(n_full):                          # static, whole-vreg slices
            part = jnp.maximum(part, x_ref[0, :, pl.ds(i * cw, cw)])
        if rem > 0:                                      # static partial last chunk
            chunk = x_ref[0, :, pl.ds(n_full * cw, cw)]
            lane = jax.lax.broadcasted_iota(jnp.int32, chunk.shape, 1)
            part = jnp.maximum(part, jnp.where(lane < rem, chunk, min_val))
        acc_ref[...] = part

    if tail_valid == hw_tile:
        # Every K block is fully valid: single mask-free path.
        fold(hw_tile)
    else:
        # Only the last K block is partial; keep the steady state mask-free.
        @pl.when(k != num_k - 1)
        def _steady():
            fold(hw_tile)

        @pl.when(k == num_k - 1)
        def _tail():
            fold(tail_valid)

    @pl.when(k == num_k - 1)
    def _finalize():
        # Single cross-lane (XLU) reduce per output block; lane-dense store.
        o_ref[...] = (
            jnp.max(acc_ref[...], axis=-1).reshape(o_ref.shape).astype(o_ref.dtype)
        )


def my_adaptive_max_pool2d(x, *, block_bytes=8 * 1024 * 1024):
    """Equivalent of F.max_pool2d(x, kernel_size=(H, W)) -> shape (N, C, 1, 1)."""
    N, C, H, W = x.shape
    HW = H * W
    dtype = x.dtype
    itemsize = jnp.dtype(dtype).itemsize

    # Flatten spatial dims (free view: NCHW is contiguous over H, W).
    x3 = x.reshape(N, C, HW)

    # Channel tile: full C when it fits one 128-row tile, else 128.
    ct = C if C <= _LANES else _LANES

    # Chunk width: ~16 vregs per chunk regardless of ct (bounds both register
    # pressure and the length of the unrolled max chain).
    cw = _LANES * max(1, min(16, 16 // _cdiv(ct, 8)))

    # HW tile: multiple of cw, capped by the per-block byte budget and by a
    # max chain length of 128 chunks.
    links = max(1, min(block_bytes // (ct * cw * itemsize), 128))
    hw_t_cap = links * cw
    hw_pad = _cdiv(HW, cw) * cw
    if hw_pad > hw_t_cap:
        hw_t = hw_t_cap
    else:
        hw_t = hw_pad
        # Avoid a degenerate 1-2 step grid (no DMA/compute overlap) when the
        # parallel axes are tiny: split HW so there are >= 4 total grid steps.
        par_blocks = N * _cdiv(C, ct)
        if par_blocks < 4 and hw_pad > cw:
            k_target = min(_cdiv(4, par_blocks), hw_pad // cw)
            if k_target > 1:
                hw_t = _cdiv(_cdiv(hw_pad, k_target), cw) * cw

    grid = (N, _cdiv(C, ct), _cdiv(HW, hw_t))

    if jnp.issubdtype(dtype, jnp.floating):
        min_val = -jnp.inf
    else:
        min_val = int(jnp.iinfo(dtype).min)

    kernel = functools.partial(
        _global_maxpool_kernel, hw_total=HW, hw_tile=hw_t, cw=cw, min_val=min_val
    )

    # 2x double-buffered input blocks + tiny acc/output blocks + headroom.
    # Kept explicit so raising block_bytes never silently exceeds v5e's 16 MiB
    # scoped default; stays well under every generation's physical VMEM.
    vmem_limit = int(min(2 * ct * hw_t * itemsize + (4 << 20), 60 << 20))

    out = pl.pallas_call(
        kernel,
        out_shape=jax.ShapeDtypeStruct((N, 1, C), dtype),
        grid_spec=pltpu.PrefetchScalarGridSpec(
            num_scalar_prefetch=0,
            grid=grid,
            in_specs=[pl.BlockSpec((1, ct, hw_t), lambda n, c, k: (n, c, k))],
            out_specs=pl.BlockSpec((1, 1, ct), lambda n, c, k: (n, 0, c)),
            scratch_shapes=[pltpu.VMEM((ct, cw), dtype)],
        ),
        compiler_params=pltpu.CompilerParams(
            dimension_semantics=("parallel", "parallel", "arbitrary"),
            vmem_limit_bytes=vmem_limit,
        ),
        cost_estimate=pl.CostEstimate(
            flops=N * C * HW,
            transcendentals=0,
            bytes_accessed=N * C * HW * itemsize + N * C * itemsize,
        ),
    )(x3)

    # NOTE: when C > 128 and C % 128 != 0, the last C block reads padded/garbage
    # rows from the input tile; they only reach out-of-bounds output rows that
    # Pallas discards on writeback, so results are unaffected.
    return out.reshape(N, C, 1, 1)


if __name__ == "__main__":
    k1, k2, k3 = jax.random.split(jax.random.PRNGKey(0), 3)

    # Primary case from the module spec.
    x = jax.random.normal(k1, (2, 4, 16, 16), dtype=jnp.float32)
    out = jax.block_until_ready(my_adaptive_max_pool2d(x))
    ref = jnp.max(x, axis=(2, 3), keepdims=True)
    assert out.shape == (2, 4, 1, 1), out.shape
    assert out.dtype == x.dtype, out.dtype
    assert jnp.array_equal(out, ref), "mismatch vs reference (primary)"

    # Multi-block reduction with a partial HW tail (exercises steady + masked paths).
    y = jax.random.normal(k2, (1, 128, 40, 40), dtype=jnp.float32)
    out2 = jax.block_until_ready(my_adaptive_max_pool2d(y))
    ref2 = jnp.max(y, axis=(2, 3), keepdims=True)
    assert jnp.array_equal(out2, ref2), "mismatch vs reference (tail path)"

    # Tiny, non-aligned spatial extent (single padded block, masked chunk).
    z = jax.random.normal(k3, (1, 8, 13, 10), dtype=jnp.float32)
    out3 = jax.block_until_ready(my_adaptive_max_pool2d(z))
    ref3 = jnp.max(z, axis=(2, 3), keepdims=True)
    assert jnp.array_equal(out3, ref3), "mismatch vs reference (small/odd HW)"

    print("KERNEL_OK")
</pallas_src>

<mosaic_0001>
module attributes {stable_mosaic.version = 11 : i64} {
  func.func @_global_maxpool_kernel(%arg0: i32, %arg1: i32, %arg2: i32, %arg3: memref<1x4x2048xf32, #tpu.memory_space<vmem>>, %arg4: memref<1x1x4xf32, #tpu.memory_space<vmem>>, %arg5: memref<4x2048xf32, #tpu.memory_space<vmem>>) attributes {dimension_semantics = [#tpu.dimension_semantics<parallel>, #tpu.dimension_semantics<parallel>, #tpu.dimension_semantics<arbitrary>], iteration_bounds = array<i64: 2, 1, 1>, scalar_prefetch = 0 : i64, scratch_operands = 1 : i64, tpu.core_type = #tpu.core_type<tc>, window_params = [{transform_indices = @transform_0, window_bounds = array<i64: 1, 4, 2048>}, {transform_indices = @transform_1, window_bounds = array<i64: 1, 1, 4>}]} {
    %c0_i32 = arith.constant 0 : i32
    %0 = arith.cmpi eq, %arg2, %c0_i32 : i32
    %1 = arith.extui %0 : i1 to i32
    %c0_i32_0 = arith.constant 0 : i32
    %2 = arith.cmpi ne, %1, %c0_i32_0 : i32
    scf.if %2 {
      %cst = arith.constant 0xFF800000 : f32
      %12 = vector.broadcast %cst : f32 to vector<4x2048xf32>
      %c0 = arith.constant 0 : index
      %c0_7 = arith.constant 0 : index
      %13 = vector.load %arg5[%c0, %c0_7] : memref<4x2048xf32, #tpu.memory_space<vmem>>, vector<4x2048xf32>
      tpu.vector_store %arg5[%c0, %c0_7], %12 {strides = array<i32>} : memref<4x2048xf32, #tpu.memory_space<vmem>>, vector<4x2048xf32>,
    } else {
    }
    %c0_i32_1 = arith.constant 0 : i32
    %3 = arith.cmpi ne, %arg2, %c0_i32_1 : i32
    %4 = arith.extui %3 : i1 to i32
    %c0_i32_2 = arith.constant 0 : i32
    %5 = arith.cmpi ne, %4, %c0_i32_2 : i32
    scf.if %5 {
      %c0 = arith.constant 0 : index
      %c0_7 = arith.constant 0 : index
      %12 = vector.load %arg5[%c0, %c0_7] : memref<4x2048xf32, #tpu.memory_space<vmem>>, vector<4x2048xf32>
      %c0_8 = arith.constant 0 : index
      %c0_9 = arith.constant 0 : index
      %c0_10 = arith.constant 0 : index
      %13 = vector.load %arg3[%c0_8, %c0_9, %c0_10] : memref<1x4x2048xf32, #tpu.memory_space<vmem>>, vector<1x4x2048xf32>
      %14 = vector.shape_cast %13 : vector<1x4x2048xf32> to vector<4x2048xf32>
      %15 = arith.maximumf %12, %14 : vector<4x2048xf32>
      %c0_11 = arith.constant 0 : index
      %c0_12 = arith.constant 0 : index
      %16 = vector.load %arg5[%c0_11, %c0_12] : memref<4x2048xf32, #tpu.memory_space<vmem>>, vector<4x2048xf32>
      tpu.vector_store %arg5[%c0_11, %c0_12], %15 {strides = array<i32>} : memref<4x2048xf32, #tpu.memory_space<vmem>>, vector<4x2048xf32>,
    } else {
    }
    %c0_i32_3 = arith.constant 0 : i32
    %6 = arith.cmpi eq, %arg2, %c0_i32_3 : i32
    %7 = arith.extui %6 : i1 to i32
    %c0_i32_4 = arith.constant 0 : i32
    %8 = arith.cmpi ne, %7, %c0_i32_4 : i32
    scf.if %8 {
      %c0 = arith.constant 0 : index
      %c0_7 = arith.constant 0 : index
      %12 = vector.load %arg5[%c0, %c0_7] : memref<4x2048xf32, #tpu.memory_space<vmem>>, vector<4x2048xf32>
      %c0_8 = arith.constant 0 : index
      %c0_9 = arith.constant 0 : index
      %c0_10 = arith.constant 0 : index
      %13 = vector.load %arg3[%c0_8, %c0_9, %c0_10] : memref<1x4x2048xf32, #tpu.memory_space<vmem>>, vector<1x4x2048xf32>
      %14 = vector.shape_cast %13 : vector<1x4x2048xf32> to vector<4x2048xf32>
      %15 = tpu.iota {dimensions = array<i32: 1>} : vector<4x2048xi32>
      %c256_i32 = arith.constant 256 : i32
      %16 = vector.broadcast %c256_i32 : i32 to vector<4x2048xi32>
      %17 = arith.cmpi slt, %15, %16 : vector<4x2048xi32>
      %cst = arith.constant 0xFF800000 : f32
      %18 = vector.broadcast %cst : f32 to vector<4x2048xf32>
      %19 = arith.select %17, %14, %18 : vector<4x2048xi1>, vector<4x2048xf32>
      %20 = arith.maximumf %12, %19 : vector<4x2048xf32>
      %c0_11 = arith.constant 0 : index
      %c0_12 = arith.constant 0 : index
      %21 = vector.load %arg5[%c0_11, %c0_12] : memref<4x2048xf32, #tpu.memory_space<vmem>>, vector<4x2048xf32>
      tpu.vector_store %arg5[%c0_11, %c0_12], %20 {strides = array<i32>} : memref<4x2048xf32, #tpu.memory_space<vmem>>, vector<4x2048xf32>,
    } else {
    }
    %c0_i32_5 = arith.constant 0 : i32
    %9 = arith.cmpi eq, %arg2, %c0_i32_5 : i32
    %10 = arith.extui %9 : i1 to i32
    %c0_i32_6 = arith.constant 0 : i32
    %11 = arith.cmpi ne, %10, %c0_i32_6 : i32
    scf.if %11 {
      %c0 = arith.constant 0 : index
      %c0_7 = arith.constant 0 : index
      %12 = vector.load %arg5[%c0, %c0_7] : memref<4x2048xf32, #tpu.memory_space<vmem>>, vector<4x2048xf32>
      %cst = arith.constant dense<0xFF800000> : vector<4xf32>
      %13 = vector.multi_reduction <maximumf>, %12, %cst [1] : vector<4x2048xf32> to vector<4xf32>
      %14 = vector.shape_cast %13 : vector<4xf32> to vector<1x1x4xf32>
      %c0_8 = arith.constant 0 : index
      %c0_9 = arith.constant 0 : index
      %c0_10 = arith.constant 0 : index
      %15 = vector.load %arg4[%c0_8, %c0_9, %c0_10] : memref<1x1x4xf32, #tpu.memory_space<vmem>>, vector<1x1x4xf32>
      tpu.vector_store %arg4[%c0_8, %c0_9, %c0_10], %14 {strides = array<i32>} : memref<1x1x4xf32, #tpu.memory_space<vmem>>, vector<1x1x4xf32>,
    } else {
    }
    return
  }
  func.func @transform_0(%arg0: i32, %arg1: i32, %arg2: i32) -> (i32, i32, i32) {
    %c0_i32 = arith.constant 0 : i32
    return %arg0, %arg1, %arg2 : i32, i32, i32
  }
  func.func @transform_1(%arg0: i32, %arg1: i32, %arg2: i32) -> (i32, i32, i32) {
    %c0_i32 = arith.constant 0 : i32
    %c0_i32_0 = arith.constant 0 : i32
    return %arg0, %c0_i32, %arg1 : i32, i32, i32
  }
}

</mosaic_0001>

<llo_original>
// kernel: tpu_custom_call.1
$region0: #{tpu_custom_call.1}
  #allocation0 [shape = 'u32[]', space=smem, size = 0x4, offset = 0x4, fixed_abs, tag = 'smem constant byte address 0x4 - core index']
  #allocation1 [shape = 'u32[144,128]{1,0:T(1,128)}', space=vmem, size = 0x12000, scoped, tag = 'internal scratch']
  #allocation2 [shape = 'f32[4,2048]{1,0:T(4,128)}', space=vmem, size = 0x8000, scoped, tag = 'scratch operand']
  %s0 = inlined_call_operand.hbm [shape: f32[2,4,256], index: 0, kind: input, shape index: {}]
  %s1 = inlined_call_operand.hbm [shape: f32[2,1,4], index: 1, kind: output, shape index: {}]
  %s2 = sld [smem:[#allocation0]]
  $region53: #{tpu_custom_call.1} parent=0
    _
  %s4 = ssub.s32 1, %s2
  %s5 = scalar_select 0, %s4, %s2
  $region1: #{tpu_custom_call.1} parent=0
    #allocation3 [shape = 'u8[65536]{0}', space=vmem, size = 0x10000, scoped, tag = 'input window, operand 0']
    #allocation4 [shape = 's32[2]{0}', space=sflag, size = 0x8, scoped, tag = 'scoped memory for tpu_custom_call.1']
    #allocation5 [shape = 's32[2]{0}', space=sflag, size = 0x8, scoped, tag = 'scoped memory for tpu_custom_call.1']
    #allocation6 [shape = 'u8[1024]{0}', space=vmem, size = 0x400, scoped, tag = 'output window, operand 0']
    %6 = vsyncpa [#allocation4], 0
    %s7 = scalar_lea.sflag [#allocation4], 1
    %8 = vsyncpa %s7, 0
    %9 = vsyncpa [#allocation5], 0
    %s10 = scalar_lea.sflag [#allocation5], 1
    %11 = vsyncpa %s10, 0
    loop: start=0, step=1, limit=4
    $region2: #{tpu_custom_call.1} parent=1 // loop_pre_header
      _
    $region3: #{tpu_custom_call.1} parent=1 // loop_header
      %s13 = sphi 0, %s17
      %p14 = scmp.ge.s32.totalorder %s13, 4
      %s20 = sphi 0, %s39
      %s21 = sphi 0, %s35
      %s22 = sphi 0, %s31
      %s23 = sphi 0, %s20
      %s24 = sphi 0, %s21
      %s25 = sphi 0, %s22
      %s26 = sphi 0, %s23
      %s27 = sphi 0, %s24
      %s28 = sphi 0, %s25
      %s46 = sphi 0, %s48
      %s49 = sphi 0, %s46
      %s50 = sphi 0, %s49
      %s66 = sphi 0, %s50
      %s74 = sphi 0, %s76
      %s77 = sphi 0, %s74
      %s78 = sphi 0, %s77
      %s94 = sphi 0, %s78
    $region4: #{tpu_custom_call.1} parent=1 // loop_header_branch
      %16 = sbr.rel (%p14) target = $region8
    $region5: #{tpu_custom_call.1} parent=1 // loop_body
      %s18 = ssub.s32 %s13, 1
      %s19 = ssub.s32 %s13, 2
      %s29 = sadd.s32 1, %s22
      %p30 = scmp.ge.s32.totalorder %s29, 1
      %s31 = scalar_select %p30, 0, %s29
      %s32 = sadd.s32 1, %s21
      %s33 = scalar_select %p30, %s32, %s21
      %p34 = scmp.ge.s32.totalorder %s33, 1
      %s35 = scalar_select %p34, 0, %s33
      %s36 = sadd.s32 1, %s20
      %s37 = scalar_select %p34, %s36, %s20
      %p38 = scmp.ge.s32.totalorder %s37, 2
      %s39 = scalar_select %p38, 0, %s37
      %s40 = ssub.s32 %s20, %s39
      %s41 = ssub.s32 %s21, %s35
      %s42 = sor.u32 %s40, %s41
      %s43 = ssub.s32 %s22, %s31
      %s44 = sor.u32 %s42, %s43
      %p45 = scmp.eq.s32.totalorder %s44, 0
      %s47 = sadd.s32 %s46, 1
      %s48 = scalar_select %p45, %s46, %s47
      %p51 = pneg %p45
      %p52 = scmp.eq.s32.totalorder %s13, 1
      %p53 = por %p51, %p52
      %p54 = scmp.ne.s32.totalorder %s46, %s49
      %p55 = scmp.eq.s32.totalorder %s13, 0
      %p56 = por %p54, %p55
      %p57 = scmp.ne.s32.totalorder %s46, %s49
      %p58 = scmp.eq.s32.totalorder %s18, 1
      %p59 = por %p57, %p58
      %p60 = scmp.ne.s32.totalorder %s49, %s50
      %p61 = scmp.eq.s32.totalorder %s18, 0
      %p62 = por %p60, %p61
      %p63 = scmp.ne.s32.totalorder %s49, %s50
      %p64 = scmp.eq.s32.totalorder %s19, 1
      %p65 = por %p63, %p64
      %p67 = scmp.ne.s32.totalorder %s50, %s66
      %p68 = scmp.eq.s32.totalorder %s19, 0
      %p69 = por %p67, %p68
      %s70 = ssub.s32 %s20, %s39
      %s71 = ssub.s32 %s21, %s35
      %s72 = sor.u32 %s70, %s71
      %p73 = scmp.eq.s32.totalorder %s72, 0
      %s75 = sadd.s32 %s74, 1
      %s76 = scalar_select %p73, %s74, %s75
      %p79 = pneg %p73
      %p80 = scmp.eq.s32.totalorder %s13, 1
      %p81 = por %p79, %p80
      %p82 = scmp.ne.s32.totalorder %s74, %s77
      %p83 = scmp.eq.s32.totalorder %s13, 0
      %p84 = por %p82, %p83
      %p85 = scmp.ne.s32.totalorder %s74, %s77
      %p86 = scmp.eq.s32.totalorder %s18, 1
      %p87 = por %p85, %p86
      %p88 = scmp.ne.s32.totalorder %s77, %s78
      %p89 = scmp.eq.s32.totalorder %s18, 0
      %p90 = por %p88, %p89
      %p91 = scmp.ne.s32.totalorder %s77, %s78
      %p92 = scmp.eq.s32.totalorder %s19, 1
      %p93 = por %p91, %p92
      %p95 = scmp.ne.s32.totalorder %s78, %s94
      %p96 = scmp.eq.s32.totalorder %s19, 0
      %p97 = por %p95, %p96
      %p98 = scmp.le.s32.totalorder 1, %s13
      %p99 = scmp.lt.s32.totalorder %s13, 3
      %p100 = pnand %p98, %p99
      %p101 = pneg %p100
      // Predicated region
      $region9: #{tpu_custom_call.1} parent=5 // pred_check
        _
      $region10: #{tpu_custom_call.1} parent=5 // pred_check_branch
        %103 = sbr.rel (%p100) target = $region12
      $region11: #{tpu_custom_call.1} parent=5 // pred_region
        %s104 = ssub.s32 %s13, 1
      $region12: #{tpu_custom_call.1} parent=5 // pred_fallthru
        _
      %p105 = scmp.lt.s32.totalorder %s13, 2
      // Predicated region
      $region13: #{tpu_custom_call.1} parent=5 // pred_check
        %p106 = pneg %p105
      $region14: #{tpu_custom_call.1} parent=5 // pred_check_branch
        %108 = sbr.rel (%p106) target = $region16
      $region15: #{tpu_custom_call.1} parent=5 // pred_region
        // Predicated region
        $region17: #{tpu_custom_call.1} parent=15 // pred_check
          %p109 = pneg %p56
        $region18: #{tpu_custom_call.1} parent=15 // pred_check_branch
          %111 = sbr.rel (%p109) target = $region20
        $region19: #{tpu_custom_call.1} parent=15 // pred_region
          %s112 = sand.u32 %s46, 1
          %s113 = scalar_lea.sflag [#allocation4], %s112
          %s114 = sand.u32 %s46, 1
          %s115 = smul.addr %s114, 64
          %s116 = scalar_lea.vmem [#allocation3], %s115
          %s117 = smul.u32 16, %s22
          %s118 = ssub.s32 2, %s117
          %s119 = smul.u32 64, %s118
          %s121 = ssub.s32 1024, %s119
          %122 = vsyncadd %s113, %s121
          %p123 = scmp.ne.s32.totalorder 0, %s119
          %s124 = smul.addr %s21, 2
          %s125 = sadd.s32 %s117, %s124
          %s126 = smul.addr %s20, 2
          %s127 = sadd.s32 %s125, %s126
          %s128 = smul.addr %s127, 64
          %s129 = scalar_lea.hbm %s0, %s128
          %s130 = smul.u32 %s118, 4
          %s131 = sshll.u32 %s130, 4
          %s132 = sshll.u32 %s116, 4
          %s133 = int_to_ptr.vmem [resolvable:$true] %s132
          %135 = dma.hbm_to_vmem [thread:$0]  (%p123), %s129, %s131, %s133, %s113
        $region20: #{tpu_custom_call.1} parent=15 // pred_fallthru
          _
      $region16: #{tpu_custom_call.1} parent=5 // pred_fallthru
        _
      %p136 = scmp.le.s32.totalorder 1, %s13
      %p137 = scmp.lt.s32.totalorder %s13, 3
      %p138 = pnand %p136, %p137
      %p139 = pneg %p138
      // Predicated region
      $region21: #{tpu_custom_call.1} parent=5 // pred_check
        _
      $region22: #{tpu_custom_call.1} parent=5 // pred_check_branch
        %141 = sbr.rel (%p138) target = $region24
      $region23: #{tpu_custom_call.1} parent=5 // pred_region
        %s142 = ssub.s32 %s13, 1
        %s143 = sand.u32 %s49, 1
        %s144 = scalar_lea.sflag [#allocation4], %s143
        %s145 = sand.u32 %s49, 1
        %s146 = smul.addr %s145, 64
        %s147 = scalar_lea.vmem [#allocation3], %s146
        // Predicated region
        $region25: #{tpu_custom_call.1} parent=23 // pred_check
          %p148 = pneg %p62
        $region26: #{tpu_custom_call.1} parent=23 // pred_check_branch
          %150 = sbr.rel (%p148) target = $region28
        $region27: #{tpu_custom_call.1} parent=23 // pred_region
          %151 = dma.done %s144, 1024
        $region28: #{tpu_custom_call.1} parent=23 // pred_fallthru
          _
        %s152 = sand.u32 %s49, 1
        %s153 = scalar_lea.sflag [#allocation4], %s152
        %s154 = sand.u32 %s49, 1
        %s155 = smul.addr %s154, 64
        %s156 = scalar_lea.vmem [#allocation3], %s155
        %p157 = pneg %p62
        %p158 = pneg %p59
        %p159 = pneg %p90
        %p160 = pneg %p87
        %s161 = sand.u32 %s77, 1
        %s162 = scalar_lea.sflag [#allocation5], %s161
        %s163 = sand.u32 %s77, 1
        %s164 = scalar_lea.vmem [#allocation6], %s163
        %s165 = smul.u32 16, %s25
        %s166 = ssub.s32 2, %s165
        %s167 = smul.u32 64, %s166
        %p168 = scmp.eq.s32.totalorder %s25, 0
        // Predicated region
        $region29: #{tpu_custom_call.1} parent=23 // pred_check
          %p169 = pneg %p168
        $region30: #{tpu_custom_call.1} parent=23 // pred_check_branch
          %171 = sbr.rel (%p169) target = $region32
        $region31: #{tpu_custom_call.1} parent=23 // pred_region
          %172 = vst [vmem:[#allocation2] sm:$0xff] -inf
          %173 = vst [vmem:[#allocation2 + $0x8] sm:$0xff] -inf
          %174 = vst [vmem:[#allocation2 + $0x10] sm:$0xff] -inf
          %175 = vst [vmem:[#allocation2 + $0x18] sm:$0xff] -inf
          %176 = vst [vmem:[#allocation2 + $0x20] sm:$0xff] -inf
          %177 = vst [vmem:[#allocation2 + $0x28] sm:$0xff] -inf
          %178 = vst [vmem:[#allocation2 + $0x30] sm:$0xff] -inf
          %179 = vst [vmem:[#allocation2 + $0x38] sm:$0xff] -inf
        $region32: #{tpu_custom_call.1} parent=23 // pred_fallthru
          _
        %p180 = scmp.ne.s32.totalorder %s25, 0
        // Predicated region
        $region33: #{tpu_custom_call.1} parent=23 // pred_check
          %p181 = pneg %p180
        $region34: #{tpu_custom_call.1} parent=23 // pred_check_branch
          %183 = sbr.rel (%p181) target = $region36
        $region35: #{tpu_custom_call.1} parent=23 // pred_region
          %v184 = vld [vmem:[#allocation2] sm:$0xff]
          %v185 = vld [vmem:[#allocation2 + $0x8] sm:$0xff]
          %v186 = vld [vmem:[#allocation2 + $0x10] sm:$0xff]
          %v187 = vld [vmem:[#allocation2 + $0x18] sm:$0xff]
          %v188 = vld [vmem:[#allocation2 + $0x20] sm:$0xff]
          %v189 = vld [vmem:[#allocation2 + $0x28] sm:$0xff]
          %v190 = vld [vmem:[#allocation2 + $0x30] sm:$0xff]
          %v191 = vld [vmem:[#allocation2 + $0x38] sm:$0xff]
          %v192 = vld [vmem:[%s147] sm:$0xff]
          %v193 = vld [vmem:[%s147 + $0x8] sm:$0xff]
          %v194 = vld [vmem:[%s147 + $0x10] sm:$0xff]
          %v195 = vld [vmem:[%s147 + $0x18] sm:$0xff]
          %v196 = vld [vmem:[%s147 + $0x20] sm:$0xff]
          %v197 = vld [vmem:[%s147 + $0x28] sm:$0xff]
          %v198 = vld [vmem:[%s147 + $0x30] sm:$0xff]
          %v199 = vld [vmem:[%s147 + $0x38] sm:$0xff]
          %v200 = vmax.f32 %v184, %v192
          %v201 = vmax.f32 %v185, %v193
          %v202 = vmax.f32 %v186, %v194
          %v203 = vmax.f32 %v187, %v195
          %v204 = vmax.f32 %v188, %v196
          %v205 = vmax.f32 %v189, %v197
          %v206 = vmax.f32 %v190, %v198
          %v207 = vmax.f32 %v191, %v199
          %208 = vst [vmem:[#allocation2] sm:$0xff] %v200
          %209 = vst [vmem:[#allocation2 + $0x8] sm:$0xff] %v201
          %210 = vst [vmem:[#allocation2 + $0x10] sm:$0xff] %v202
          %211 = vst [vmem:[#allocation2 + $0x18] sm:$0xff] %v203
          %212 = vst [vmem:[#allocation2 + $0x20] sm:$0xff] %v204
          %213 = vst [vmem:[#allocation2 + $0x28] sm:$0xff] %v205
          %214 = vst [vmem:[#allocation2 + $0x30] sm:$0xff] %v206
          %215 = vst [vmem:[#allocation2 + $0x38] sm:$0xff] %v207
        $region36: #{tpu_custom_call.1} parent=23 // pred_fallthru
          _
        // Predicated region
        $region37: #{tpu_custom_call.1} parent=23 // pred_check
          %p216 = pneg %p168
        $region38: #{tpu_custom_call.1} parent=23 // pred_check_branch
          %218 = sbr.rel (%p216) target = $region40
        $region39: #{tpu_custom_call.1} parent=23 // pred_region
          %v219 = vld [vmem:[#allocation2] sm:$0xff]
          %v220 = vld [vmem:[#allocation2 + $0x8] sm:$0xff]
          %v221 = vld [vmem:[#allocation2 + $0x10] sm:$0xff]
          %v222 = vld [vmem:[#allocation2 + $0x18] sm:$0xff]
          %v223 = vld [vmem:[#allocation2 + $0x20] sm:$0xff]
          %v224 = vld [vmem:[#allocation2 + $0x28] sm:$0xff]
          %v225 = vld [vmem:[#allocation2 + $0x30] sm:$0xff]
          %v226 = vld [vmem:[#allocation2 + $0x38] sm:$0xff]
          %v227 = vld [vmem:[%s147] sm:$0xff]
          %v228 = vld [vmem:[%s147 + $0x8] sm:$0xff]
          %v229 = vld [vmem:[%s147 + $0x10] sm:$0xff]
          %v230 = vld [vmem:[%s147 + $0x18] sm:$0xff]
          %v231 = vld [vmem:[%s147 + $0x20] sm:$0xff]
          %v232 = vld [vmem:[%s147 + $0x28] sm:$0xff]
          %v233 = vld [vmem:[%s147 + $0x30] sm:$0xff]
          %v234 = vld [vmem:[%s147 + $0x38] sm:$0xff]
          %v235 = vlaneseq
          %v236 = vand.u32 %v235, 127
          %v237 = vadd.s32 %v236, 128
          %v238 = vadd.s32 %v236, 256
          %v239 = vadd.s32 %v236, 384
          %v240 = vadd.s32 %v236, 512
          %v241 = vadd.s32 %v236, 640
          %v242 = vadd.s32 %v236, 768
          %v243 = vadd.s32 %v236, 896
          %v244 = vadd.s32 %v236, 1024
          %v245 = vadd.s32 %v236, 1152
          %v246 = vadd.s32 %v236, 1280
          %v247 = vadd.s32 %v236, 1408
          %v248 = vadd.s32 %v236, 1536
          %v249 = vadd.s32 %v236, 1664
          %v250 = vadd.s32 %v236, 1792
          %v251 = vadd.s32 %v236, 1920
          %vm252 = vcmp.lt.s32.totalorder %v236, 256
          %vm253 = vcmp.lt.s32.totalorder %v237, 256
          %vm254 = vcmp.lt.s32.totalorder %v238, 256
          %vm255 = vcmp.lt.s32.totalorder %v239, 256
          %vm256 = vcmp.lt.s32.totalorder %v240, 256
          %vm257 = vcmp.lt.s32.totalorder %v241, 256
          %vm258 = vcmp.lt.s32.totalorder %v242, 256
          %vm259 = vcmp.lt.s32.totalorder %v243, 256
          %vm260 = vcmp.lt.s32.totalorder %v244, 256
          %vm261 = vcmp.lt.s32.totalorder %v245, 256
          %vm262 = vcmp.lt.s32.totalorder %v246, 256
          %vm263 = vcmp.lt.s32.totalorder %v247, 256
          %vm264 = vcmp.lt.s32.totalorder %v248, 256
          %vm265 = vcmp.lt.s32.totalorder %v249, 256
          %vm266 = vcmp.lt.s32.totalorder %v250, 256
          %vm267 = vcmp.lt.s32.totalorder %v251, 256
          %v276 = vcombine.high %v227, %v227
          %v277 = vcombine.high %v228, %v228
          %v278 = vcombine.high %v229, %v229
          %v279 = vcombine.high %v230, %v230
          %v280 = vcombine.high %v231, %v231
          %v281 = vcombine.high %v232, %v232
          %v282 = vcombine.high %v233, %v233
          %v283 = vcombine.high %v234, %v234
          %v292 = vsel %vm252, %v227, -inf
          %v293 = vsel %vm253, %v276, -inf
          %v294 = vsel %vm254, %v228, -inf
          %v295 = vsel %vm255, %v277, -inf
          %v296 = vsel %vm256, %v229, -inf
          %v297 = vsel %vm257, %v278, -inf
          %v298 = vsel %vm258, %v230, -inf
          %v299 = vsel %vm259, %v279, -inf
          %v300 = vsel %vm260, %v231, -inf
          %v301 = vsel %vm261, %v280, -inf
          %v302 = vsel %vm262, %v232, -inf
          %v303 = vsel %vm263, %v281, -inf
          %v304 = vsel %vm264, %v233, -inf
          %v305 = vsel %vm265, %v282, -inf
          %v306 = vsel %vm266, %v234, -inf
          %v307 = vsel %vm267, %v283, -inf
          %v324 = vcombine.low %v292, %v293
          %v325 = vcombine.low %v294, %v295
          %v326 = vcombine.low %v296, %v297
          %v327 = vcombine.low %v298, %v299
          %v328 = vcombine.low %v300, %v301
          %v329 = vcombine.low %v302, %v303
          %v330 = vcombine.low %v304, %v305
          %v331 = vcombine.low %v306, %v307
          %v340 = vmax.f32 %v219, %v324
          %v341 = vmax.f32 %v220, %v325
          %v342 = vmax.f32 %v221, %v326
          %v343 = vmax.f32 %v222, %v327
          %v344 = vmax.f32 %v223, %v328
          %v345 = vmax.f32 %v224, %v329
          %v346 = vmax.f32 %v225, %v330
          %v347 = vmax.f32 %v226, %v331
          %348 = vst [vmem:[#allocation2] sm:$0xff] %v340
          %349 = vst [vmem:[#allocation2 + $0x8] sm:$0xff] %v341
          %350 = vst [vmem:[#allocation2 + $0x10] sm:$0xff] %v342
          %351 = vst [vmem:[#allocation2 + $0x18] sm:$0xff] %v343
          %352 = vst [vmem:[#allocation2 + $0x20] sm:$0xff] %v344
          %353 = vst [vmem:[#allocation2 + $0x28] sm:$0xff] %v345
          %354 = vst [vmem:[#allocation2 + $0x30] sm:$0xff] %v346
          %355 = vst [vmem:[#allocation2 + $0x38] sm:$0xff] %v347
          %v356 = vld [vmem:[#allocation2] sm:$0xff]
          %v357 = vld [vmem:[#allocation2 + $0x8] sm:$0xff]
          %v358 = vld [vmem:[#allocation2 + $0x10] sm:$0xff]
          %v359 = vld [vmem:[#allocation2 + $0x18] sm:$0xff]
          %v360 = vld [vmem:[#allocation2 + $0x20] sm:$0xff]
          %v361 = vld [vmem:[#allocation2 + $0x28] sm:$0xff]
          %v362 = vld [vmem:[#allocation2 + $0x30] sm:$0xff]
          %v363 = vld [vmem:[#allocation2 + $0x38] sm:$0xff]
          %v372 = vcombine.high %v356, %v356
          %v373 = vcombine.high %v357, %v357
          %v374 = vcombine.high %v358, %v358
          %v375 = vcombine.high %v359, %v359
          %v376 = vcombine.high %v360, %v360
          %v377 = vcombine.high %v361, %v361
          %v378 = vcombine.high %v362, %v362
          %v379 = vcombine.high %v363, %v363
          %vm388 = vcmask 1043456
          %v389 = vsel %vm388, %v356, -inf
          %v390 = vsel %vm388, %v372, -inf
          %v391 = vsel %vm388, %v357, -inf
          %v392 = vsel %vm388, %v373, -inf
          %v393 = vsel %vm388, %v358, -inf
          %v394 = vmax.f32 %v389, %v393
          %v395 = vsel %vm388, %v374, -inf
          %v396 = vmax.f32 %v390, %v395
          %v397 = vsel %vm388, %v359, -inf
          %v398 = vmax.f32 %v391, %v397
          %v399 = vsel %vm388, %v375, -inf
          %v400 = vmax.f32 %v392, %v399
          %v401 = vsel %vm388, %v360, -inf
          %v402 = vmax.f32 %v394, %v401
          %v403 = vsel %vm388, %v376, -inf
          %v404 = vmax.f32 %v396, %v403
          %v405 = vsel %vm388, %v361, -inf
          %v406 = vmax.f32 %v398, %v405
          %v407 = vsel %vm388, %v377, -inf
          %v408 = vmax.f32 %v400, %v407
          %v409 = vsel %vm388, %v362, -inf
          %v410 = vmax.f32 %v402, %v409
          %v411 = vsel %vm388, %v378, -inf
          %v412 = vmax.f32 %v404, %v411
          %v413 = vsel %vm388, %v363, -inf
          %v414 = vmax.f32 %v406, %v413
          %v415 = vsel %vm388, %v379, -inf
          %v416 = vmax.f32 %v408, %v415
          %v417 = vmax.f32 %v410, %v412
          %v418 = vmax.f32 %v414, %v416
          %v419 = vmax.f32 %v417, %v418
          %420 = vmax.xlane.f32.xlu0 %v419
          %v421 = vpop.xlane.xlu0 %420
          %v423 = vlaneseq
          %v424 = vshrl.u32 %v423, 7
          %v425 = vsub.s32 %v236, %v424
          %v426 = vrot.slane %v421, %v425
          %vm428 = vcmask 24576
          %429 = vst.msk [vmem:[%s164] sm:$0x1] %vm428, %v426
        $region40: #{tpu_custom_call.1} parent=23 // pred_fallthru
          _
        %s430 = sand.u32 %s77, 1
        %s431 = scalar_lea.sflag [#allocation5], %s430
        %s432 = sand.u32 %s77, 1
        %s433 = scalar_lea.vmem [#allocation6], %s432
        // Predicated region
        $region41: #{tpu_custom_call.1} parent=23 // pred_check
          %p434 = pneg %p87
        $region42: #{tpu_custom_call.1} parent=23 // pred_check_branch
          %436 = sbr.rel (%p434) target = $region44
        $region43: #{tpu_custom_call.1} parent=23 // pred_region
          %s438 = ssub.s32 16, 16
          %439 = vsyncadd %s431, %s438
          %s440 = sadd.s32 %s24, %s23
          %s441 = smul.addr %s440, 16
          %s442 = scalar_lea.hbm %s1, %s441
          %s444 = sshll.u32 %s433, 4
          %s445 = int_to_ptr.vmem [resolvable:$true] %s444
          %447 = dma.vmem_to_hbm [thread:$0]  %s445, 16, %s442, %s431
        $region44: #{tpu_custom_call.1} parent=23 // pred_fallthru
          _
      $region24: #{tpu_custom_call.1} parent=5 // pred_fallthru
        _
      %p448 = scmp.le.s32.totalorder 2, %s13
      // Predicated region
      $region45: #{tpu_custom_call.1} parent=5 // pred_check
        %p449 = pneg %p448
      $region46: #{tpu_custom_call.1} parent=5 // pred_check_branch
        %451 = sbr.rel (%p449) target = $region48
      $region47: #{tpu_custom_call.1} parent=5 // pred_region
        %s452 = ssub.s32 %s13, 2
        // Predicated region
        $region49: #{tpu_custom_call.1} parent=47 // pred_check
          %p453 = pneg %p93
        $region50: #{tpu_custom_call.1} parent=47 // pred_check_branch
          %455 = sbr.rel (%p453) target = $region52
        $region51: #{tpu_custom_call.1} parent=47 // pred_region
          %s456 = sand.u32 %s78, 1
          %s457 = scalar_lea.sflag [#allocation5], %s456
          %s458 = sand.u32 %s78, 1
          %s459 = scalar_lea.vmem [#allocation6], %s458
          %460 = dma.done %s457, 16
        $region52: #{tpu_custom_call.1} parent=47 // pred_fallthru
          _
      $region48: #{tpu_custom_call.1} parent=5 // pred_fallthru
        _
    $region6: #{tpu_custom_call.1} parent=1 // loop_footer
      %s17 = sadd.s32 1, %s13
    $region7: #{tpu_custom_call.1} parent=1 // loop_footer_branch
      %12 = sbr.rel target = $region3
    $region8: #{tpu_custom_call.1} parent=1 // loop_exit
      _
    %461 = vsyncpa [#allocation4], 1
    %s462 = scalar_lea.sflag [#allocation4], 1
    %463 = vsyncpa %s462, 1
    %464 = vsyncpa [#allocation5], 1
    %s465 = scalar_lea.sflag [#allocation5], 1
    %466 = vsyncpa %s465, 1

</llo_original>
